<compile_context>
chip_gen: v7x
topology: tpu7x:2x2x1
jax: 0.10.0
libtpu: 0.0.40
codegen_flags: <defaults>
</compile_context>

<pallas_src>
import functools

import jax
import jax.numpy as jnp
import numpy as np
from jax.experimental import pallas as pl
from jax.experimental.pallas import tpu as pltpu


def _round_up(x: int, m: int) -> int:
    return (x + m - 1) // m * m


def _cdiv(a: int, b: int) -> int:
    return -(-a // b)


# ----------------------------- Pallas kernel ------------------------------ #
def _declinear_kernel(num_hidden_layers, out_dim, pack_out, *refs):
    """Fused MLP: ReLU hidden layers + final linear projection.

    refs = (z_ref,
            w1_ref, b1_ref, ..., wL_ref, bL_ref,     # L = num_hidden_layers
            w_out_ref, b_out_ref,
            mu_ref)

    z is bf16 (pre-cast), weights bf16, biases f32; matmuls accumulate in f32.
    If `pack_out`, the (TM, out_dim) result is packed row-major into
    (TM * out_dim // 128, 128) so the store is unmasked and lane-dense.
    """
    z_ref = refs[0]
    mu_ref = refs[-1]
    param_refs = refs[1:-1]

    h = z_ref[...]                                     # already bf16

    # Hidden layers: Linear + ReLU (bf16 inputs, f32 accumulation on the MXU).
    for layer in range(num_hidden_layers):
        w_ref = param_refs[2 * layer]
        b_ref = param_refs[2 * layer + 1]
        acc = jnp.dot(h, w_ref[...], preferred_element_type=jnp.float32)
        acc = acc + b_ref[...]                         # (1, H_pad) broadcast
        h = jnp.maximum(acc, 0.0).astype(jnp.bfloat16)  # non_lin = ReLU

    # Output layer: fc31 (no non-linearity).
    w_out_ref = param_refs[-2]
    b_out_ref = param_refs[-1]
    mu = jnp.dot(h, w_out_ref[...], preferred_element_type=jnp.float32)
    mu = mu + b_out_ref[...]

    if pack_out:
        tm = mu.shape[0]
        # (TM, out_dim) -> (TM * out_dim // 128, 128): lane-dense, row-major.
        mu = mu[:, :out_dim].reshape(tm * out_dim // 128, 128)

    mu_ref[...] = mu.astype(mu_ref.dtype)


# --------------------------- parameter packing ----------------------------- #
def pack_params(params, weight_dtype=jnp.bfloat16):
    """Zero-pad every Linear to (8,128)-aligned tiles and cast W to bf16.

    params: list of (W, b) with W shaped (in_features, out_features); last
    pair is fc31.  Zero padding leaves the math unchanged (relu(0)=0 and
    zero weight rows/cols contribute nothing).
    """
    packed = []
    for idx, (w, b) in enumerate(params):
        fi, fo = w.shape
        fi_p = _round_up(fi, 8) if idx == 0 else _round_up(fi, 128)
        fo_p = _round_up(fo, 128)
        w_p = jnp.zeros((fi_p, fo_p), weight_dtype).at[:fi, :fo].set(
            w.astype(weight_dtype))
        b_p = jnp.zeros((1, fo_p), jnp.float32).at[0, :fo].set(
            b.astype(jnp.float32))
        packed.append((w_p, b_p))
    return packed


# ------------------------------ JAX wrapper ------------------------------- #
def dec_linear_forward(z, packed_params, data_size, *, block_rows=4096):
    """packed_params: output of pack_params(...); last pair is fc31."""
    *lead, coord_dim = z.shape
    n_rows = int(np.prod(lead)) if lead else 1
    out_dim = int(np.prod(data_size))
    num_hidden_layers = len(packed_params) - 1

    k_pad = packed_params[0][0].shape[0]    # padded coord_dim (multiple of 8)
    o_pad = packed_params[-1][0].shape[1]   # padded out_dim (multiple of 128)

    # Lane-packing of mu is possible when out_dim divides 128 exactly.
    can_pack = (0 < out_dim <= 128) and (128 % out_dim == 0)
    rows_per_lane_row = (128 // out_dim) if can_pack else 1
    row_align = 8 * rows_per_lane_row if can_pack else 8

    # >= 2 grid steps so both v7x TensorCores get work; tile size adapted to
    # n_rows so row padding stays < row_align per step (no full-tile waste).
    n_steps = max(2, _cdiv(n_rows, block_rows))
    tm = _round_up(_cdiv(n_rows, n_steps), row_align)
    n_rows_pad = tm * n_steps

    # Pre-cast z to bf16 (halves the per-row input DMA) and zero-pad to tiles.
    z2d = z.reshape(n_rows, coord_dim).astype(jnp.bfloat16)
    z2d = jnp.pad(z2d, ((0, n_rows_pad - n_rows), (0, k_pad - coord_dim)))

    flat_args = [z2d]
    in_specs = [pl.BlockSpec((tm, k_pad), lambda i: (i, 0))]
    for (w, b) in packed_params:
        flat_args.extend([w, b])
        # Constant index_map -> weights/biases stay VMEM-resident across all
        # grid steps (no re-DMA).  Single-buffering them saves only ~130 KiB
        # at these sizes, so we keep the default pipelining.
        in_specs.append(pl.BlockSpec(w.shape, lambda i: (0, 0)))
        in_specs.append(pl.BlockSpec(b.shape, lambda i: (0, 0)))

    def run(pack):
        if pack:
            out_rows = n_rows_pad // rows_per_lane_row
            out_shape = jax.ShapeDtypeStruct((out_rows, 128), z.dtype)
            out_spec = pl.BlockSpec((tm // rows_per_lane_row, 128),
                                    lambda i: (i, 0))
        else:
            out_shape = jax.ShapeDtypeStruct((n_rows_pad, o_pad), z.dtype)
            out_spec = pl.BlockSpec((tm, o_pad), lambda i: (i, 0))
        kernel = functools.partial(_declinear_kernel, num_hidden_layers,
                                   out_dim, pack)
        return pl.pallas_call(
            kernel,
            out_shape=out_shape,
            grid=(n_steps,),
            in_specs=in_specs,
            out_specs=out_spec,
            compiler_params=pltpu.CompilerParams(
                dimension_semantics=("parallel",)),  # v7x: rows over 2 TCs
        )(*flat_args)

    mu2d = None
    if can_pack:
        try:
            packed_out = run(pack=True)
            jax.block_until_ready(packed_out)        # surface lowering errors here
            # Free row-major reshape undoes the in-kernel lane packing.
            mu2d = packed_out.reshape(n_rows_pad, out_dim)
        except Exception:
            # TODO(synk): this Mosaic build cannot lower the (TM, out_dim) ->
            # (TM//k, 128) sublane->lane pack reshape; fall back to the proven
            # lane-padded output path (still no scale writeback).
            mu2d = None
    if mu2d is None:
        mu2d = run(pack=False)[:, :out_dim]

    mu = mu2d[:n_rows].reshape(*lead, *data_size)
    # scale is a constant; never write it from the kernel (saves 50% of the
    # kernel's HBM writeback) -- materialize/broadcast it here instead.
    scale = jnp.ones_like(mu)
    return mu, scale


# --------------------------- parameter init ------------------------------- #
def _init_linear(key, fan_in, fan_out, dtype=jnp.float32):
    """Match torch.nn.Linear default init: U(-1/sqrt(fan_in), 1/sqrt(fan_in))."""
    kw, kb = jax.random.split(key)
    bound = 1.0 / np.sqrt(fan_in)
    w = jax.random.uniform(kw, (fan_in, fan_out), dtype, -bound, bound)
    b = jax.random.uniform(kb, (fan_out,), dtype, -bound, bound)
    return w, b


def make_params(key, coord_dim, hidden_dim, num_hidden_layers, data_size):
    params = []
    keys = jax.random.split(key, num_hidden_layers + 1)
    params.append(_init_linear(keys[0], coord_dim, hidden_dim))
    for i in range(1, num_hidden_layers):
        params.append(_init_linear(keys[i], hidden_dim, hidden_dim))
    params.append(_init_linear(keys[-1], hidden_dim, int(np.prod(data_size))))
    return params


# ------------------------------- references -------------------------------- #
def ref_forward_f32(z, params, data_size):
    """Plain f32 reference (exact original-module semantics)."""
    *lead, _ = z.shape
    h = z.reshape(-1, z.shape[-1])
    for w, b in params[:-1]:
        h = jnp.maximum(h @ w + b, 0.0)
    w, b = params[-1]
    return (h @ w + b).reshape(*lead, *data_size)


def ref_forward_mixed(z, params, data_size):
    """Reference mimicking the kernel's mixed precision (bf16 in, f32 acc)."""
    *lead, _ = z.shape
    h = z.reshape(-1, z.shape[-1]).astype(jnp.bfloat16)
    for w, b in params[:-1]:
        a = jnp.dot(h, w.astype(jnp.bfloat16),
                    preferred_element_type=jnp.float32) + b
        h = jnp.maximum(a, 0.0).astype(jnp.bfloat16)
    w, b = params[-1]
    mu = jnp.dot(h, w.astype(jnp.bfloat16),
                 preferred_element_type=jnp.float32) + b
    return mu.reshape(*lead, *data_size)


# --------------------------------- main ----------------------------------- #
if __name__ == "__main__":
    # Module hyperparameters (synthetic, small).
    coord_dim = 6            # manifold.coord_dim
    hidden_dim = 32
    num_hidden_layers = 2
    data_size = (4, 4)       # prod(data_size) = 16

    key = jax.random.PRNGKey(0)
    k_z, k_p = jax.random.split(key)

    # z: (batch=2, seq=8, coord_dim=6)
    z = jax.random.normal(k_z, (2, 8, coord_dim), dtype=jnp.float32)
    params = make_params(k_p, coord_dim, hidden_dim, num_hidden_layers, data_size)
    packed = pack_params(params)     # pad to (8,128) tiles, weights -> bf16

    mu, scale = dec_linear_forward(z, packed, data_size)
    jax.block_until_ready((mu, scale))

    assert mu.shape == (2, 8, 4, 4), mu.shape
    assert scale.shape == (2, 8, 4, 4), scale.shape

    # Tight check vs a reference using the same mixed precision.
    mu_mixed = ref_forward_mixed(z, params, data_size)
    np.testing.assert_allclose(np.asarray(mu), np.asarray(mu_mixed),
                               rtol=1e-4, atol=1e-4)

    # Loose sanity check vs the pure-f32 module semantics (bf16 rounding only).
    mu_f32 = ref_forward_f32(z, params, data_size)
    max_abs_err = float(jnp.max(jnp.abs(mu - mu_f32)))
    assert max_abs_err < 0.15, f"bf16 path deviates too much: {max_abs_err}"

    np.testing.assert_array_equal(np.asarray(scale),
                                  np.ones((2, 8, 4, 4), np.float32))

    print("KERNEL_OK")
</pallas_src>

<mosaic_0001>
module attributes {stable_mosaic.version = 11 : i64} {
  func.func @_declinear_kernel(%arg0: i32, %arg1: memref<64x8xbf16, #tpu.memory_space<vmem>>, %arg2: memref<8x128xbf16, #tpu.memory_space<vmem>>, %arg3: memref<1x128xf32, #tpu.memory_space<vmem>>, %arg4: memref<128x128xbf16, #tpu.memory_space<vmem>>, %arg5: memref<1x128xf32, #tpu.memory_space<vmem>>, %arg6: memref<128x128xbf16, #tpu.memory_space<vmem>>, %arg7: memref<1x128xf32, #tpu.memory_space<vmem>>, %arg8: memref<8x128xf32, #tpu.memory_space<vmem>>) attributes {dimension_semantics = [#tpu.dimension_semantics<parallel>], iteration_bounds = array<i64: 2>, scalar_prefetch = 0 : i64, scratch_operands = 0 : i64, tpu.core_type = #tpu.core_type<tc>, window_params = [{transform_indices = @transform_0, window_bounds = array<i64: 64, 8>}, {pipeline_mode = #tpu.pipeline_mode<synchronous>, transform_indices = @transform_1, window_bounds = array<i64: 8, 128>}, {pipeline_mode = #tpu.pipeline_mode<synchronous>, transform_indices = @transform_2, window_bounds = array<i64: 1, 128>}, {pipeline_mode = #tpu.pipeline_mode<synchronous>, transform_indices = @transform_3, window_bounds = array<i64: 128, 128>}, {pipeline_mode = #tpu.pipeline_mode<synchronous>, transform_indices = @transform_4, window_bounds = array<i64: 1, 128>}, {pipeline_mode = #tpu.pipeline_mode<synchronous>, transform_indices = @transform_5, window_bounds = array<i64: 128, 128>}, {pipeline_mode = #tpu.pipeline_mode<synchronous>, transform_indices = @transform_6, window_bounds = array<i64: 1, 128>}, {transform_indices = @transform_7, window_bounds = array<i64: 8, 128>}]} {
    %c0 = arith.constant 0 : index
    %c0_0 = arith.constant 0 : index
    %0 = vector.load %arg1[%c0, %c0_0] : memref<64x8xbf16, #tpu.memory_space<vmem>>, vector<64x8xbf16>
    %c0_1 = arith.constant 0 : index
    %c0_2 = arith.constant 0 : index
    %1 = vector.load %arg2[%c0_1, %c0_2] : memref<8x128xbf16, #tpu.memory_space<vmem>>, vector<8x128xbf16>
    %cst = arith.constant dense<0.000000e+00> : vector<64x128xf32>
    %2 = tpu.matmul %0, %1, %cst {dimension_numbers = #tpu.dot_dimension_numbers<[1], [0], [0], [1], [0, 0, 1, 1], [], []>} : vector<64x8xbf16>, vector<8x128xbf16>, vector<64x128xf32> -> vector<64x128xf32>
    %c0_3 = arith.constant 0 : index
    %c0_4 = arith.constant 0 : index
    %3 = vector.load %arg3[%c0_3, %c0_4] : memref<1x128xf32, #tpu.memory_space<vmem>>, vector<1x128xf32>
    %4 = vector.broadcast %3 : vector<1x128xf32> to vector<64x128xf32>
    %5 = arith.addf %2, %4 : vector<64x128xf32>
    %cst_5 = arith.constant 0.000000e+00 : f32
    %6 = vector.broadcast %cst_5 : f32 to vector<64x128xf32>
    %7 = arith.maximumf %5, %6 : vector<64x128xf32>
    %8 = arith.truncf %7 : vector<64x128xf32> to vector<64x128xbf16>
    %c0_6 = arith.constant 0 : index
    %c0_7 = arith.constant 0 : index
    %9 = vector.load %arg4[%c0_6, %c0_7] : memref<128x128xbf16, #tpu.memory_space<vmem>>, vector<128x128xbf16>
    %cst_8 = arith.constant dense<0.000000e+00> : vector<64x128xf32>
    %10 = tpu.matmul %8, %9, %cst_8 {dimension_numbers = #tpu.dot_dimension_numbers<[1], [0], [0], [1], [0, 0, 1, 1], [], []>} : vector<64x128xbf16>, vector<128x128xbf16>, vector<64x128xf32> -> vector<64x128xf32>
    %c0_9 = arith.constant 0 : index
    %c0_10 = arith.constant 0 : index
    %11 = vector.load %arg5[%c0_9, %c0_10] : memref<1x128xf32, #tpu.memory_space<vmem>>, vector<1x128xf32>
    %12 = vector.broadcast %11 : vector<1x128xf32> to vector<64x128xf32>
    %13 = arith.addf %10, %12 : vector<64x128xf32>
    %cst_11 = arith.constant 0.000000e+00 : f32
    %14 = vector.broadcast %cst_11 : f32 to vector<64x128xf32>
    %15 = arith.maximumf %13, %14 : vector<64x128xf32>
    %16 = arith.truncf %15 : vector<64x128xf32> to vector<64x128xbf16>
    %c0_12 = arith.constant 0 : index
    %c0_13 = arith.constant 0 : index
    %17 = vector.load %arg6[%c0_12, %c0_13] : memref<128x128xbf16, #tpu.memory_space<vmem>>, vector<128x128xbf16>
    %cst_14 = arith.constant dense<0.000000e+00> : vector<64x128xf32>
    %18 = tpu.matmul %16, %17, %cst_14 {dimension_numbers = #tpu.dot_dimension_numbers<[1], [0], [0], [1], [0, 0, 1, 1], [], []>} : vector<64x128xbf16>, vector<128x128xbf16>, vector<64x128xf32> -> vector<64x128xf32>
    %c0_15 = arith.constant 0 : index
    %c0_16 = arith.constant 0 : index
    %19 = vector.load %arg7[%c0_15, %c0_16] : memref<1x128xf32, #tpu.memory_space<vmem>>, vector<1x128xf32>
    %20 = vector.broadcast %19 : vector<1x128xf32> to vector<64x128xf32>
    %21 = arith.addf %18, %20 : vector<64x128xf32>
    %22 = vector.extract_strided_slice %21 {offsets = [0, 0], sizes = [64, 16], strides = [1, 1]} : vector<64x128xf32> to vector<64x16xf32>
    %23 = vector.shape_cast %22 : vector<64x16xf32> to vector<8x128xf32>
    %c0_17 = arith.constant 0 : index
    %c0_18 = arith.constant 0 : index
    %24 = vector.load %arg8[%c0_17, %c0_18] : memref<8x128xf32, #tpu.memory_space<vmem>>, vector<8x128xf32>
    tpu.vector_store %arg8[%c0_17, %c0_18], %23 {strides = array<i32>} : memref<8x128xf32, #tpu.memory_space<vmem>>, vector<8x128xf32>,
    return
  }
  func.func @transform_0(%arg0: i32) -> (i32, i32) {
    %c0_i32 = arith.constant 0 : i32
    %c0_i32_0 = arith.constant 0 : i32
    return %arg0, %c0_i32 : i32, i32
  }
  func.func @transform_1(%arg0: i32) -> (i32, i32) {
    %c0_i32 = arith.constant 0 : i32
    %c0_i32_0 = arith.constant 0 : i32
    %c0_i32_1 = arith.constant 0 : i32
    return %c0_i32, %c0_i32_0 : i32, i32
  }
  func.func @transform_2(%arg0: i32) -> (i32, i32) {
    %c0_i32 = arith.constant 0 : i32
    %c0_i32_0 = arith.constant 0 : i32
    %c0_i32_1 = arith.constant 0 : i32
    return %c0_i32, %c0_i32_0 : i32, i32
  }
  func.func @transform_3(%arg0: i32) -> (i32, i32) {
    %c0_i32 = arith.constant 0 : i32
    %c0_i32_0 = arith.constant 0 : i32
    %c0_i32_1 = arith.constant 0 : i32
    return %c0_i32, %c0_i32_0 : i32, i32
  }
  func.func @transform_4(%arg0: i32) -> (i32, i32) {
    %c0_i32 = arith.constant 0 : i32
    %c0_i32_0 = arith.constant 0 : i32
    %c0_i32_1 = arith.constant 0 : i32
    return %c0_i32, %c0_i32_0 : i32, i32
  }
  func.func @transform_5(%arg0: i32) -> (i32, i32) {
    %c0_i32 = arith.constant 0 : i32
    %c0_i32_0 = arith.constant 0 : i32
    %c0_i32_1 = arith.constant 0 : i32
    return %c0_i32, %c0_i32_0 : i32, i32
  }
  func.func @transform_6(%arg0: i32) -> (i32, i32) {
    %c0_i32 = arith.constant 0 : i32
    %c0_i32_0 = arith.constant 0 : i32
    %c0_i32_1 = arith.constant 0 : i32
    return %c0_i32, %c0_i32_0 : i32, i32
  }
  func.func @transform_7(%arg0: i32) -> (i32, i32) {
    %c0_i32 = arith.constant 0 : i32
    %c0_i32_0 = arith.constant 0 : i32
    return %arg0, %c0_i32 : i32, i32
  }
}

module attributes {stable_mosaic.version = 11 : i64} {
  func.func @_declinear_kernel(%arg0: i32, %arg1: memref<64x8xbf16, #tpu.memory_space<vmem>>, %arg2: memref<8x128xbf16, #tpu.memory_space<vmem>>, %arg3: memref<1x128xf32, #tpu.memory_space<vmem>>, %arg4: memref<128x128xbf16, #tpu.memory_space<vmem>>, %arg5: memref<1x128xf32, #tpu.memory_space<vmem>>, %arg6: memref<128x128xbf16, #tpu.memory_space<vmem>>, %arg7: memref<1x128xf32, #tpu.memory_space<vmem>>, %arg8: memref<64x128xf32, #tpu.memory_space<vmem>>) attributes {dimension_semantics = [#tpu.dimension_semantics<parallel>], iteration_bounds = array<i64: 2>, scalar_prefetch = 0 : i64, scratch_operands = 0 : i64, tpu.core_type = #tpu.core_type<tc>, window_params = [{transform_indices = @transform_0, window_bounds = array<i64: 64, 8>}, {pipeline_mode = #tpu.pipeline_mode<synchronous>, transform_indices = @transform_1, window_bounds = array<i64: 8, 128>}, {pipeline_mode = #tpu.pipeline_mode<synchronous>, transform_indices = @transform_2, window_bounds = array<i64: 1, 128>}, {pipeline_mode = #tpu.pipeline_mode<synchronous>, transform_indices = @transform_3, window_bounds = array<i64: 128, 128>}, {pipeline_mode = #tpu.pipeline_mode<synchronous>, transform_indices = @transform_4, window_bounds = array<i64: 1, 128>}, {pipeline_mode = #tpu.pipeline_mode<synchronous>, transform_indices = @transform_5, window_bounds = array<i64: 128, 128>}, {pipeline_mode = #tpu.pipeline_mode<synchronous>, transform_indices = @transform_6, window_bounds = array<i64: 1, 128>}, {transform_indices = @transform_7, window_bounds = array<i64: 64, 128>}]} {
    %c0 = arith.constant 0 : index
    %c0_0 = arith.constant 0 : index
    %0 = vector.load %arg1[%c0, %c0_0] : memref<64x8xbf16, #tpu.memory_space<vmem>>, vector<64x8xbf16>
    %c0_1 = arith.constant 0 : index
    %c0_2 = arith.constant 0 : index
    %1 = vector.load %arg2[%c0_1, %c0_2] : memref<8x128xbf16, #tpu.memory_space<vmem>>, vector<8x128xbf16>
    %cst = arith.constant dense<0.000000e+00> : vector<64x128xf32>
    %2 = tpu.matmul %0, %1, %cst {dimension_numbers = #tpu.dot_dimension_numbers<[1], [0], [0], [1], [0, 0, 1, 1], [], []>} : vector<64x8xbf16>, vector<8x128xbf16>, vector<64x128xf32> -> vector<64x128xf32>
    %c0_3 = arith.constant 0 : index
    %c0_4 = arith.constant 0 : index
    %3 = vector.load %arg3[%c0_3, %c0_4] : memref<1x128xf32, #tpu.memory_space<vmem>>, vector<1x128xf32>
    %4 = vector.broadcast %3 : vector<1x128xf32> to vector<64x128xf32>
    %5 = arith.addf %2, %4 : vector<64x128xf32>
    %cst_5 = arith.constant 0.000000e+00 : f32
    %6 = vector.broadcast %cst_5 : f32 to vector<64x128xf32>
    %7 = arith.maximumf %5, %6 : vector<64x128xf32>
    %8 = arith.truncf %7 : vector<64x128xf32> to vector<64x128xbf16>
    %c0_6 = arith.constant 0 : index
    %c0_7 = arith.constant 0 : index
    %9 = vector.load %arg4[%c0_6, %c0_7] : memref<128x128xbf16, #tpu.memory_space<vmem>>, vector<128x128xbf16>
    %cst_8 = arith.constant dense<0.000000e+00> : vector<64x128xf32>
    %10 = tpu.matmul %8, %9, %cst_8 {dimension_numbers = #tpu.dot_dimension_numbers<[1], [0], [0], [1], [0, 0, 1, 1], [], []>} : vector<64x128xbf16>, vector<128x128xbf16>, vector<64x128xf32> -> vector<64x128xf32>
    %c0_9 = arith.constant 0 : index
    %c0_10 = arith.constant 0 : index
    %11 = vector.load %arg5[%c0_9, %c0_10] : memref<1x128xf32, #tpu.memory_space<vmem>>, vector<1x128xf32>
    %12 = vector.broadcast %11 : vector<1x128xf32> to vector<64x128xf32>
    %13 = arith.addf %10, %12 : vector<64x128xf32>
    %cst_11 = arith.constant 0.000000e+00 : f32
    %14 = vector.broadcast %cst_11 : f32 to vector<64x128xf32>
    %15 = arith.maximumf %13, %14 : vector<64x128xf32>
    %16 = arith.truncf %15 : vector<64x128xf32> to vector<64x128xbf16>
    %c0_12 = arith.constant 0 : index
    %c0_13 = arith.constant 0 : index
    %17 = vector.load %arg6[%c0_12, %c0_13] : memref<128x128xbf16, #tpu.memory_space<vmem>>, vector<128x128xbf16>
    %cst_14 = arith.constant dense<0.000000e+00> : vector<64x128xf32>
    %18 = tpu.matmul %16, %17, %cst_14 {dimension_numbers = #tpu.dot_dimension_numbers<[1], [0], [0], [1], [0, 0, 1, 1], [], []>} : vector<64x128xbf16>, vector<128x128xbf16>, vector<64x128xf32> -> vector<64x128xf32>
    %c0_15 = arith.constant 0 : index
    %c0_16 = arith.constant 0 : index
    %19 = vector.load %arg7[%c0_15, %c0_16] : memref<1x128xf32, #tpu.memory_space<vmem>>, vector<1x128xf32>
    %20 = vector.broadcast %19 : vector<1x128xf32> to vector<64x128xf32>
    %21 = arith.addf %18, %20 : vector<64x128xf32>
    %c0_17 = arith.constant 0 : index
    %c0_18 = arith.constant 0 : index
    %22 = vector.load %arg8[%c0_17, %c0_18] : memref<64x128xf32, #tpu.memory_space<vmem>>, vector<64x128xf32>
    tpu.vector_store %arg8[%c0_17, %c0_18], %21 {strides = array<i32>} : memref<64x128xf32, #tpu.memory_space<vmem>>, vector<64x128xf32>,
    return
  }
  func.func @transform_0(%arg0: i32) -> (i32, i32) {
    %c0_i32 = arith.constant 0 : i32
    %c0_i32_0 = arith.constant 0 : i32
    return %arg0, %c0_i32 : i32, i32
  }
  func.func @transform_1(%arg0: i32) -> (i32, i32) {
    %c0_i32 = arith.constant 0 : i32
    %c0_i32_0 = arith.constant 0 : i32
    %c0_i32_1 = arith.constant 0 : i32
    return %c0_i32, %c0_i32_0 : i32, i32
  }
  func.func @transform_2(%arg0: i32) -> (i32, i32) {
    %c0_i32 = arith.constant 0 : i32
    %c0_i32_0 = arith.constant 0 : i32
    %c0_i32_1 = arith.constant 0 : i32
    return %c0_i32, %c0_i32_0 : i32, i32
  }
  func.func @transform_3(%arg0: i32) -> (i32, i32) {
    %c0_i32 = arith.constant 0 : i32
    %c0_i32_0 = arith.constant 0 : i32
    %c0_i32_1 = arith.constant 0 : i32
    return %c0_i32, %c0_i32_0 : i32, i32
  }
  func.func @transform_4(%arg0: i32) -> (i32, i32) {
    %c0_i32 = arith.constant 0 : i32
    %c0_i32_0 = arith.constant 0 : i32
    %c0_i32_1 = arith.constant 0 : i32
    return %c0_i32, %c0_i32_0 : i32, i32
  }
  func.func @transform_5(%arg0: i32) -> (i32, i32) {
    %c0_i32 = arith.constant 0 : i32
    %c0_i32_0 = arith.constant 0 : i32
    %c0_i32_1 = arith.constant 0 : i32
    return %c0_i32, %c0_i32_0 : i32, i32
  }
  func.func @transform_6(%arg0: i32) -> (i32, i32) {
    %c0_i32 = arith.constant 0 : i32
    %c0_i32_0 = arith.constant 0 : i32
    %c0_i32_1 = arith.constant 0 : i32
    return %c0_i32, %c0_i32_0 : i32, i32
  }
  func.func @transform_7(%arg0: i32) -> (i32, i32) {
    %c0_i32 = arith.constant 0 : i32
    %c0_i32_0 = arith.constant 0 : i32
    return %arg0, %c0_i32 : i32, i32
  }
}

</mosaic_0001>

<llo_original>
// kernel: tpu_custom_call.1
$region0: #{tpu_custom_call.1}
  #allocation0 [shape = 'u32[]', space=smem, size = 0x4, offset = 0x4, fixed_abs, tag = 'smem constant byte address 0x4 - core index']
  #allocation1 [shape = 'u32[144,128]{1,0:T(1,128)}', space=vmem, size = 0x12000, scoped, tag = 'internal scratch']
  %s0 = inlined_call_operand.vmem [shape: bf16[128,8], index: 0, kind: input, shape index: {}]
  %s1 = inlined_call_operand.vmem [shape: bf16[8,128], index: 1, kind: input, shape index: {}]
  %s2 = inlined_call_operand.vmem [shape: f32[1,128], index: 2, kind: input, shape index: {}]
  %s3 = inlined_call_operand.vmem [shape: bf16[128,128], index: 3, kind: input, shape index: {}]
  %s4 = inlined_call_operand.vmem [shape: f32[1,128], index: 4, kind: input, shape index: {}]
  %s5 = inlined_call_operand.hbm [shape: bf16[128,128], index: 5, kind: input, shape index: {}]
  %s6 = inlined_call_operand.vmem [shape: f32[1,128], index: 6, kind: input, shape index: {}]
  %s7 = inlined_call_operand.hbm [shape: f32[128,128], index: 7, kind: output, shape index: {}]
  %s8 = sld [smem:[#allocation0]]
  $region65: #{tpu_custom_call.1} parent=0
    _
  %s10 = ssub.s32 1, %s8
  %s11 = scalar_select 0, %s10, %s8
  $region1: #{tpu_custom_call.1} parent=0
    #allocation2 [shape = 'u8[32768]{0}', space=vmem, size = 0x8000, scoped, tag = 'input window, operand 5, single buffered']
    #allocation3 [shape = 's32[2]{0}', space=sflag, size = 0x8, scoped, tag = 'scoped memory for tpu_custom_call.1']
    #allocation4 [shape = 's32[2]{0}', space=sflag, size = 0x8, scoped, tag = 'scoped memory for tpu_custom_call.1']
    #allocation5 [shape = 'u8[65536]{0}', space=vmem, size = 0x10000, scoped, tag = 'output window, operand 0']
    %12 = vsyncpa [#allocation3], 0
    %13 = vsyncpa [#allocation4], 0
    %s14 = scalar_lea.sflag [#allocation4], 1
    %15 = vsyncpa %s14, 0
    loop: start=0, step=1, limit=4
    $region2: #{tpu_custom_call.1} parent=1 // loop_pre_header
      _
    $region3: #{tpu_custom_call.1} parent=1 // loop_header
      %s17 = sphi 0, %s21
      %p18 = scmp.ge.s32.totalorder %s17, 4
      %s27 = sphi 0, %s29
      %s30 = sphi 0, %s27
      %s31 = sphi 0, %s30
      %s47 = sphi 0, %s31
      %s51 = sphi 0, %s51
      %s53 = sphi 0, %s51
      %s54 = sphi 0, %s53
      %s68 = sphi 0, %s54
      %s72 = sphi 0, %s72
      %s74 = sphi 0, %s72
      %s75 = sphi 0, %s74
      %s89 = sphi 0, %s75
      %s93 = sphi 0, %s93
      %s95 = sphi 0, %s93
      %s96 = sphi 0, %s95
      %s110 = sphi 0, %s96
      %s114 = sphi 0, %s114
      %s116 = sphi 0, %s114
      %s117 = sphi 0, %s116
      %s131 = sphi 0, %s117
      %s135 = sphi 0, %s135
      %s137 = sphi 0, %s135
      %s138 = sphi 0, %s137
      %s152 = sphi 0, %s138
      %s156 = sphi 0, %s156
      %s158 = sphi 0, %s156
      %s159 = sphi 0, %s158
      %s173 = sphi 0, %s159
      %s179 = sphi 0, %s181
      %s182 = sphi 0, %s179
      %s183 = sphi 0, %s182
      %s199 = sphi 0, %s183
    $region4: #{tpu_custom_call.1} parent=1 // loop_header_branch
      %20 = sbr.rel (%p18) target = $region8
    $region5: #{tpu_custom_call.1} parent=1 // loop_body
      %s22 = ssub.s32 %s17, 1
      %s23 = ssub.s32 %s17, 2
      %s24 = sadd.s32 %s17, 1
      %s25 = ssub.s32 %s17, %s24
      %p26 = scmp.eq.s32.totalorder %s25, 0
      %s28 = sadd.s32 %s27, 1
      %s29 = scalar_select %p26, %s27, %s28
      %p32 = pneg %p26
      %p33 = scmp.eq.s32.totalorder %s17, 1
      %p34 = por %p32, %p33
      %p35 = scmp.ne.s32.totalorder %s27, %s30
      %p36 = scmp.eq.s32.totalorder %s17, 0
      %p37 = por %p35, %p36
      %p38 = scmp.ne.s32.totalorder %s27, %s30
      %p39 = scmp.eq.s32.totalorder %s22, 1
      %p40 = por %p38, %p39
      %p41 = scmp.ne.s32.totalorder %s30, %s31
      %p42 = scmp.eq.s32.totalorder %s22, 0
      %p43 = por %p41, %p42
      %p44 = scmp.ne.s32.totalorder %s30, %s31
      %p45 = scmp.eq.s32.totalorder %s23, 1
      %p46 = por %p44, %p45
      %p48 = scmp.ne.s32.totalorder %s31, %s47
      %p49 = scmp.eq.s32.totalorder %s23, 0
      %p50 = por %p48, %p49
      %s52 = sadd.s32 %s51, 1
      %p55 = scmp.eq.s32.totalorder %s17, 1
      %p56 = scmp.ne.s32.totalorder %s51, %s53
      %p57 = scmp.eq.s32.totalorder %s17, 0
      %p58 = por %p56, %p57
      %p59 = scmp.ne.s32.totalorder %s51, %s53
      %p60 = scmp.eq.s32.totalorder %s22, 1
      %p61 = por %p59, %p60
      %p62 = scmp.ne.s32.totalorder %s53, %s54
      %p63 = scmp.eq.s32.totalorder %s22, 0
      %p64 = por %p62, %p63
      %p65 = scmp.ne.s32.totalorder %s53, %s54
      %p66 = scmp.eq.s32.totalorder %s23, 1
      %p67 = por %p65, %p66
      %p69 = scmp.ne.s32.totalorder %s54, %s68
      %p70 = scmp.eq.s32.totalorder %s23, 0
      %p71 = por %p69, %p70
      %s73 = sadd.s32 %s72, 1
      %p76 = scmp.eq.s32.totalorder %s17, 1
      %p77 = scmp.ne.s32.totalorder %s72, %s74
      %p78 = scmp.eq.s32.totalorder %s17, 0
      %p79 = por %p77, %p78
      %p80 = scmp.ne.s32.totalorder %s72, %s74
      %p81 = scmp.eq.s32.totalorder %s22, 1
      %p82 = por %p80, %p81
      %p83 = scmp.ne.s32.totalorder %s74, %s75
      %p84 = scmp.eq.s32.totalorder %s22, 0
      %p85 = por %p83, %p84
      %p86 = scmp.ne.s32.totalorder %s74, %s75
      %p87 = scmp.eq.s32.totalorder %s23, 1
      %p88 = por %p86, %p87
      %p90 = scmp.ne.s32.totalorder %s75, %s89
      %p91 = scmp.eq.s32.totalorder %s23, 0
      %p92 = por %p90, %p91
      %s94 = sadd.s32 %s93, 1
      %p97 = scmp.eq.s32.totalorder %s17, 1
      %p98 = scmp.ne.s32.totalorder %s93, %s95
      %p99 = scmp.eq.s32.totalorder %s17, 0
      %p100 = por %p98, %p99
      %p101 = scmp.ne.s32.totalorder %s93, %s95
      %p102 = scmp.eq.s32.totalorder %s22, 1
      %p103 = por %p101, %p102
      %p104 = scmp.ne.s32.totalorder %s95, %s96
      %p105 = scmp.eq.s32.totalorder %s22, 0
      %p106 = por %p104, %p105
      %p107 = scmp.ne.s32.totalorder %s95, %s96
      %p108 = scmp.eq.s32.totalorder %s23, 1
      %p109 = por %p107, %p108
      %p111 = scmp.ne.s32.totalorder %s96, %s110
      %p112 = scmp.eq.s32.totalorder %s23, 0
      %p113 = por %p111, %p112
      %s115 = sadd.s32 %s114, 1
      %p118 = scmp.eq.s32.totalorder %s17, 1
      %p119 = scmp.ne.s32.totalorder %s114, %s116
      %p120 = scmp.eq.s32.totalorder %s17, 0
      %p121 = por %p119, %p120
      %p122 = scmp.ne.s32.totalorder %s114, %s116
      %p123 = scmp.eq.s32.totalorder %s22, 1
      %p124 = por %p122, %p123
      %p125 = scmp.ne.s32.totalorder %s116, %s117
      %p126 = scmp.eq.s32.totalorder %s22, 0
      %p127 = por %p125, %p126
      %p128 = scmp.ne.s32.totalorder %s116, %s117
      %p129 = scmp.eq.s32.totalorder %s23, 1
      %p130 = por %p128, %p129
      %p132 = scmp.ne.s32.totalorder %s117, %s131
      %p133 = scmp.eq.s32.totalorder %s23, 0
      %p134 = por %p132, %p133
      %s136 = sadd.s32 %s135, 1
      %p139 = scmp.eq.s32.totalorder %s17, 1
      %p140 = scmp.ne.s32.totalorder %s135, %s137
      %p141 = scmp.eq.s32.totalorder %s17, 0
      %p142 = por %p140, %p141
      %p143 = scmp.ne.s32.totalorder %s135, %s137
      %p144 = scmp.eq.s32.totalorder %s22, 1
      %p145 = por %p143, %p144
      %p146 = scmp.ne.s32.totalorder %s137, %s138
      %p147 = scmp.eq.s32.totalorder %s22, 0
      %p148 = por %p146, %p147
      %p149 = scmp.ne.s32.totalorder %s137, %s138
      %p150 = scmp.eq.s32.totalorder %s23, 1
      %p151 = por %p149, %p150
      %p153 = scmp.ne.s32.totalorder %s138, %s152
      %p154 = scmp.eq.s32.totalorder %s23, 0
      %p155 = por %p153, %p154
      %s157 = sadd.s32 %s156, 1
      %p160 = scmp.eq.s32.totalorder %s17, 1
      %p161 = scmp.ne.s32.totalorder %s156, %s158
      %p162 = scmp.eq.s32.totalorder %s17, 0
      %p163 = por %p161, %p162
      %p164 = scmp.ne.s32.totalorder %s156, %s158
      %p165 = scmp.eq.s32.totalorder %s22, 1
      %p166 = por %p164, %p165
      %p167 = scmp.ne.s32.totalorder %s158, %s159
      %p168 = scmp.eq.s32.totalorder %s22, 0
      %p169 = por %p167, %p168
      %p170 = scmp.ne.s32.totalorder %s158, %s159
      %p171 = scmp.eq.s32.totalorder %s23, 1
      %p172 = por %p170, %p171
      %p174 = scmp.ne.s32.totalorder %s159, %s173
      %p175 = scmp.eq.s32.totalorder %s23, 0
      %p176 = por %p174, %p175
      %s177 = ssub.s32 %s17, %s24
      %p178 = scmp.eq.s32.totalorder %s177, 0
      %s180 = sadd.s32 %s179, 1
      %s181 = scalar_select %p178, %s179, %s180
      %p184 = pneg %p178
      %p185 = scmp.eq.s32.totalorder %s17, 1
      %p186 = por %p184, %p185
      %p187 = scmp.ne.s32.totalorder %s179, %s182
      %p188 = scmp.eq.s32.totalorder %s17, 0
      %p189 = por %p187, %p188
      %p190 = scmp.ne.s32.totalorder %s179, %s182
      %p191 = scmp.eq.s32.totalorder %s22, 1
      %p192 = por %p190, %p191
      %p193 = scmp.ne.s32.totalorder %s182, %s183
      %p194 = scmp.eq.s32.totalorder %s22, 0
      %p195 = por %p193, %p194
      %p196 = scmp.ne.s32.totalorder %s182, %s183
      %p197 = scmp.eq.s32.totalorder %s23, 1
      %p198 = por %p196, %p197
      %p200 = scmp.ne.s32.totalorder %s183, %s199
      %p201 = scmp.eq.s32.totalorder %s23, 0
      %p202 = por %p200, %p201
      %p203 = scmp.le.s32.totalorder 1, %s17
      %p204 = scmp.lt.s32.totalorder %s17, 3
      %p205 = pnand %p203, %p204
      %p206 = pneg %p205
      // Predicated region
      $region9: #{tpu_custom_call.1} parent=5 // pred_check
        _
      $region10: #{tpu_custom_call.1} parent=5 // pred_check_branch
        %208 = sbr.rel (%p205) target = $region12
      $region11: #{tpu_custom_call.1} parent=5 // pred_region
        %s209 = ssub.s32 %s17, 1
        // Predicated region
        $region13: #{tpu_custom_call.1} parent=11 // pred_check
          %p210 = pneg %p64
        $region14: #{tpu_custom_call.1} parent=11 // pred_check_branch
          %212 = sbr.rel (%p210) target = $region16
        $region15: #{tpu_custom_call.1} parent=11 // pred_region
          _
        $region16: #{tpu_custom_call.1} parent=11 // pred_fallthru
          _
        // Predicated region
        $region17: #{tpu_custom_call.1} parent=11 // pred_check
          %p213 = pneg %p85
        $region18: #{tpu_custom_call.1} parent=11 // pred_check_branch
          %215 = sbr.rel (%p213) target = $region20
        $region19: #{tpu_custom_call.1} parent=11 // pred_region
          _
        $region20: #{tpu_custom_call.1} parent=11 // pred_fallthru
          _
        // Predicated region
        $region21: #{tpu_custom_call.1} parent=11 // pred_check
          %p216 = pneg %p106
        $region22: #{tpu_custom_call.1} parent=11 // pred_check_branch
          %218 = sbr.rel (%p216) target = $region24
        $region23: #{tpu_custom_call.1} parent=11 // pred_region
          _
        $region24: #{tpu_custom_call.1} parent=11 // pred_fallthru
          _
        // Predicated region
        $region25: #{tpu_custom_call.1} parent=11 // pred_check
          %p219 = pneg %p127
        $region26: #{tpu_custom_call.1} parent=11 // pred_check_branch
          %221 = sbr.rel (%p219) target = $region28
        $region27: #{tpu_custom_call.1} parent=11 // pred_region
          _
        $region28: #{tpu_custom_call.1} parent=11 // pred_fallthru
          _
        // Predicated region
        $region29: #{tpu_custom_call.1} parent=11 // pred_check
          %p222 = pneg %p148
        $region30: #{tpu_custom_call.1} parent=11 // pred_check_branch
          %224 = sbr.rel (%p222) target = $region32
        $region31: #{tpu_custom_call.1} parent=11 // pred_region
          %s226 = ssub.s32 1024, 1024
          %227 = vsyncadd [#allocation3], %s226
          %s228 = sshll.u32 [#allocation2], 4
          %s229 = int_to_ptr.vmem [resolvable:$true] %s228
          %234 = dma.hbm_to_vmem [thread:$0]  %s5, 1024, %s229, [#allocation3], 64, 64, 4
        $region32: #{tpu_custom_call.1} parent=11 // pred_fallthru
          _
        // Predicated region
        $region33: #{tpu_custom_call.1} parent=11 // pred_check
          %p235 = pneg %p169
        $region34: #{tpu_custom_call.1} parent=11 // pred_check_branch
          %237 = sbr.rel (%p235) target = $region36
        $region35: #{tpu_custom_call.1} parent=11 // pred_region
          _
        $region36: #{tpu_custom_call.1} parent=11 // pred_fallthru
          _
      $region12: #{tpu_custom_call.1} parent=5 // pred_fallthru
        _
      %p238 = scmp.lt.s32.totalorder %s17, 2
      // Predicated region
      $region37: #{tpu_custom_call.1} parent=5 // pred_check
        %p239 = pneg %p238
      $region38: #{tpu_custom_call.1} parent=5 // pred_check_branch
        %241 = sbr.rel (%p239) target = $region40
      $region39: #{tpu_custom_call.1} parent=5 // pred_region
        // Predicated region
        $region41: #{tpu_custom_call.1} parent=39 // pred_check
          %p242 = pneg %p37
        $region42: #{tpu_custom_call.1} parent=39 // pred_check_branch
          %244 = sbr.rel (%p242) target = $region44
        $region43: #{tpu_custom_call.1} parent=39 // pred_region
          %s245 = smul.u32 8, %s17
          %p246 = scmp.lt.s32.totalorder %s245, 15
          %s247 = scalar_select %p246, %s245, 15
          %s248 = smul.addr %s247, 4
          %s249 = scalar_lea.vmem %s0, %s248
          %s250 = smul.u32 8, %s17
        $region44: #{tpu_custom_call.1} parent=39 // pred_fallthru
          _
      $region40: #{tpu_custom_call.1} parent=5 // pred_fallthru
        _
      %p251 = scmp.le.s32.totalorder 1, %s17
      %p252 = scmp.lt.s32.totalorder %s17, 3
      %p253 = pnand %p251, %p252
      %p254 = pneg %p253
      // Predicated region
      $region45: #{tpu_custom_call.1} parent=5 // pred_check
        _
      $region46: #{tpu_custom_call.1} parent=5 // pred_check_branch
        %256 = sbr.rel (%p253) target = $region48
      $region47: #{tpu_custom_call.1} parent=5 // pred_region
        %s257 = ssub.s32 %s17, 1
        // Predicated region
        $region49: #{tpu_custom_call.1} parent=47 // pred_check
          %p258 = pneg %p148
        $region50: #{tpu_custom_call.1} parent=47 // pred_check_branch
          %260 = sbr.rel (%p258) target = $region52
        $region51: #{tpu_custom_call.1} parent=47 // pred_region
          %261 = dma.done [#allocation3], 1024
        $region52: #{tpu_custom_call.1} parent=47 // pred_fallthru
          _
        %s262 = smul.u32 8, %s22
        %p263 = scmp.lt.s32.totalorder %s262, 15
        %s264 = scalar_select %p263, %s262, 15
        %s265 = smul.addr %s264, 4
        %s266 = scalar_lea.vmem %s0, %s265
        %p267 = pneg %p43
        %p268 = pneg %p40
        %p269 = pneg %p64
        %p270 = pneg %p61
        %p271 = pneg %p85
        %p272 = pneg %p82
        %p273 = pneg %p106
        %p274 = pneg %p103
        %p275 = pneg %p127
        %p276 = pneg %p124
        %p277 = pneg %p148
        %p278 = pneg %p145
        %p279 = pneg %p169
        %p280 = pneg %p166
        %p281 = pneg %p195
        %p282 = pneg %p192
        %s283 = sand.u32 %s182, 1
        %s284 = scalar_lea.sflag [#allocation4], %s283
        %s285 = sand.u32 %s182, 1
        %s286 = smul.addr %s285, 64
        %s287 = scalar_lea.vmem [#allocation5], %s286
        %s288 = smul.u32 8, %s22
        %p289 = scmp.lt.s32.totalorder %s288, 15
        %s290 = scalar_select %p289, %s288, 15
        %s291 = smul.addr %s290, 4
        %s292 = scalar_lea.vmem %s0, %s291
        %s293 = smul.u32 8, %s22
        %s294 = smul.u32 8, %s22
        %v296 = vld [vmem:[%s292] sm:$0xf]
        %v297 = vld [vmem:[%s292 + $0x4] sm:$0xf]
        %v298 = vld [vmem:[%s292 + $0x8] sm:$0xf]
        %v299 = vld [vmem:[%s292 + $0xc] sm:$0xf]
        %v300 = vld [vmem:[%s292 + $0x10] sm:$0xf]
        %v301 = vld [vmem:[%s292 + $0x14] sm:$0xf]
        %v302 = vld [vmem:[%s292 + $0x18] sm:$0xf]
        %v303 = vld [vmem:[%s292 + $0x1c] sm:$0xf]
        %v304 = vld [vmem:[%s1] sm:$0xf]
        %v305 = vld [vmem:[%s2] sm:$0x1]
        %v307 = vlaneseq
        %v308 = vshrl.u32 %v307, 7
        %v309 = vsub.s32 0, %v308
        %v310 = vrot.slane %v305, %v309
        %v320 = vunpack.c.l.b16 %v296
        %v321 = vunpack.c.l.b16 %v297
        %v322 = vunpack.c.l.b16 %v298
        %v323 = vunpack.c.l.b16 %v299
        %v324 = vunpack.c.l.b16 %v300
        %v325 = vunpack.c.l.b16 %v301
        %v326 = vunpack.c.l.b16 %v302
        %v327 = vunpack.c.l.b16 %v303
        %v328 = vpack.c.b16 %v321, %v320
        %v329 = vpack.c.b16 %v323, %v322
        %v330 = vpack.c.b16 %v325, %v324
        %v331 = vpack.c.b16 %v327, %v326
        %vm332 = vcmask 64512
        %v334 = vsel %vm332, %v328, 0
        %v337 = vsel %vm332, %v329, 0
        %v340 = vsel %vm332, %v330, 0
        %v343 = vsel %vm332, %v331, 0
        %vm345 = vcmask 1043456
        %v347 = vsel %vm345, %v304, 0
        %349 = vmatprep.subr.bf16.mxu0 0
        %350 = vmatpush1.bf16.msra.mxu0 %v347
        %351 = vmatprep.subr.bf16.mxu0 0
        %352 = vmatpush1.bf16.msra.mxu0 0
        %353 = vmatprep.subr.bf16.mxu0 0
        %354 = vmatpush1.bf16.msra.mxu0 0
        %355 = vmatprep.subr.bf16.mxu0 0
        %356 = vmatpush1.bf16.msra.mxu0 0
        %357 = vmatprep.subr.bf16.mxu0 0
        %358 = vmatpush1.bf16.msra.mxu0 0
        %359 = vmatprep.subr.bf16.mxu0 0
        %360 = vmatpush1.bf16.msra.mxu0 0
        %361 = vmatprep.subr.bf16.mxu0 0
        %362 = vmatpush1.bf16.msra.mxu0 0
        %363 = vmatprep.subr.bf16.mxu0 0
        %364 = vmatpush1.bf16.msra.mxu0 0
        %365 = vmatprep.subr.bf16.mxu0 0
        %366 = vmatpush1.bf16.msra.mxu0 0
        %367 = vmatprep.subr.bf16.mxu0 0
        %368 = vmatpush1.bf16.msra.mxu0 0
        %369 = vmatprep.subr.bf16.mxu0 0
        %370 = vmatpush1.bf16.msra.mxu0 0
        %371 = vmatprep.subr.bf16.mxu0 0
        %372 = vmatpush1.bf16.msra.mxu0 0
        %373 = vmatprep.subr.bf16.mxu0 0
        %374 = vmatpush1.bf16.msra.mxu0 0
        %375 = vmatprep.subr.bf16.mxu0 0
        %376 = vmatpush1.bf16.msra.mxu0 0
        %377 = vmatprep.subr.bf16.mxu0 0
        %378 = vmatpush1.bf16.msra.mxu0 0
        %379 = vmatprep.subr.bf16.mxu0 0
        %380 = vmatpush1.bf16.msra.mxu0 0
        %381 = vmatprep.mubr.bf16.mxu0 0
        %382 = vmatmul.mubr.bf16.gmra.mrb[0].mxu0 %v334
        %v383 = vpop.f32.mrb[0].mxu0
        %v384 = vadd.f32 %v310, %v383
        %v385 = vpop.f32.mrb[0].mxu0
        %v386 = vpop.f32.mrb[0].mxu0
        %v387 = vadd.f32 %v310, %v386
        %v388 = vpop.f32.mrb[0].mxu0
        %389 = vmatprep.mubr.bf16.mxu0 0
        %390 = vmatmul.mubr.bf16.gmra.mrb[0].mxu0 %v337
        %v391 = vpop.f32.mrb[0].mxu0
        %v392 = vadd.f32 %v310, %v391
        %v393 = vpop.f32.mrb[0].mxu0
        %v394 = vpop.f32.mrb[0].mxu0
        %v395 = vadd.f32 %v310, %v394
        %v396 = vpop.f32.mrb[0].mxu0
        %397 = vmatprep.mubr.bf16.mxu0 0
        %398 = vmatmul.mubr.bf16.gmra.mrb[0].mxu0 %v340
        %v399 = vpop.f32.mrb[0].mxu0
        %v400 = vadd.f32 %v310, %v399
        %v401 = vpop.f32.mrb[0].mxu0
        %v402 = vpop.f32.mrb[0].mxu0
        %v403 = vadd.f32 %v310, %v402
        %v404 = vpop.f32.mrb[0].mxu0
        %405 = vmatprep.mubr.bf16.mxu0 0
        %406 = vmatmul.mubr.bf16.gmra.mrb[0].mxu0 %v343
        %v407 = vpop.f32.mrb[0].mxu0
        %v408 = vadd.f32 %v310, %v407
        %v409 = vpop.f32.mrb[0].mxu0
        %v410 = vpop.f32.mrb[0].mxu0
        %v411 = vadd.f32 %v310, %v410
        %v412 = vpop.f32.mrb[0].mxu0
        %413 = vdwg.mxu0
        %v414 = vmax.f32 %v384, 0.0
        %v415 = vmax.f32 %v387, 0.0
        %v416 = vmax.f32 %v392, 0.0
        %v417 = vmax.f32 %v395, 0.0
        %v418 = vmax.f32 %v400, 0.0
        %v419 = vmax.f32 %v403, 0.0
        %v420 = vmax.f32 %v408, 0.0
        %v421 = vmax.f32 %v411, 0.0
        %v422 = vpack.c.bf16 %v415, %v414
        %v423 = vpack.c.bf16 %v417, %v416
        %v424 = vpack.c.bf16 %v419, %v418
        %v425 = vpack.c.bf16 %v421, %v420
        %v426 = vld [vmem:[%s3] sm:$0xf]
        %v427 = vld [vmem:[%s3 + $0x4] sm:$0xf]
        %v428 = vld [vmem:[%s3 + $0x8] sm:$0xf]
        %v429 = vld [vmem:[%s3 + $0xc] sm:$0xf]
        %v430 = vld [vmem:[%s3 + $0x10] sm:$0xf]
        %v431 = vld [vmem:[%s3 + $0x14] sm:$0xf]
        %v432 = vld [vmem:[%s3 + $0x18] sm:$0xf]
        %v433 = vld [vmem:[%s3 + $0x1c] sm:$0xf]
        %v434 = vld [vmem:[%s3 + $0x20] sm:$0xf]
        %v435 = vld [vmem:[%s3 + $0x24] sm:$0xf]
        %v436 = vld [vmem:[%s3 + $0x28] sm:$0xf]
        %v437 = vld [vmem:[%s3 + $0x2c] sm:$0xf]
        %v438 = vld [vmem:[%s3 + $0x30] sm:$0xf]
        %v439 = vld [vmem:[%s3 + $0x34] sm:$0xf]
        %v440 = vld [vmem:[%s3 + $0x38] sm:$0xf]
        %v441 = vld [vmem:[%s3 + $0x3c] sm:$0xf]
        %v442 = vld [vmem:[%s4] sm:$0x1]
        %v444 = vlaneseq
        %v445 = vshrl.u32 %v444, 7
        %v446 = vsub.s32 0, %v445
        %v447 = vrot.slane %v442, %v446
        %v465 = vunpack.c.l.b16 %v426
        %v466 = vunpack.c.l.b16 %v427
        %v467 = vunpack.c.l.b16 %v428
        %v468 = vunpack.c.l.b16 %v429
        %v469 = vunpack.c.l.b16 %v430
        %v470 = vunpack.c.l.b16 %v431
        %v471 = vunpack.c.l.b16 %v432
        %v472 = vunpack.c.l.b16 %v433
        %v473 = vunpack.c.l.b16 %v434
        %v474 = vunpack.c.l.b16 %v435
        %v475 = vunpack.c.l.b16 %v436
        %v476 = vunpack.c.l.b16 %v437
        %v477 = vunpack.c.l.b16 %v438
        %v478 = vunpack.c.l.b16 %v439
        %v479 = vunpack.c.l.b16 %v440
        %v480 = vunpack.c.l.b16 %v441
        %v481 = vpack.c.b16 %v466, %v465
        %v482 = vpack.c.b16 %v468, %v467
        %v483 = vpack.c.b16 %v470, %v469
        %v484 = vpack.c.b16 %v472, %v471
        %v485 = vpack.c.b16 %v474, %v473
        %v486 = vpack.c.b16 %v476, %v475
        %v487 = vpack.c.b16 %v478, %v477
        %v488 = vpack.c.b16 %v480, %v479
        %497 = vmatprep.subr.bf16.mxu0 0
        %498 = vmatpush1.bf16.msra.mxu0 %v481
        %499 = vmatprep.subr.bf16.mxu0 0
        %500 = vmatpush1.bf16.msra.mxu0 %v482
        %501 = vmatprep.subr.bf16.mxu0 0
        %502 = vmatpush1.bf16.msra.mxu0 %v483
        %503 = vmatprep.subr.bf16.mxu0 0
        %504 = vmatpush1.bf16.msra.mxu0 %v484
        %505 = vmatprep.subr.bf16.mxu0 0
        %506 = vmatpush1.bf16.msra.mxu0 %v485
        %507 = vmatprep.subr.bf16.mxu0 0
        %508 = vmatpush1.bf16.msra.mxu0 %v486
        %509 = vmatprep.subr.bf16.mxu0 0
        %510 = vmatpush1.bf16.msra.mxu0 %v487
        %511 = vmatprep.subr.bf16.mxu0 0
        %512 = vmatpush1.bf16.msra.mxu0 %v488
        %513 = vmatprep.subr.bf16.mxu0 0
        %514 = vmatpush1.bf16.msra.mxu0 0
        %515 = vmatprep.subr.bf16.mxu0 0
        %516 = vmatpush1.bf16.msra.mxu0 0
        %517 = vmatprep.subr.bf16.mxu0 0
        %518 = vmatpush1.bf16.msra.mxu0 0
        %519 = vmatprep.subr.bf16.mxu0 0
        %520 = vmatpush1.bf16.msra.mxu0 0
        %521 = vmatprep.subr.bf16.mxu0 0
        %522 = vmatpush1.bf16.msra.mxu0 0
        %523 = vmatprep.subr.bf16.mxu0 0
        %524 = vmatpush1.bf16.msra.mxu0 0
        %525 = vmatprep.subr.bf16.mxu0 0
        %526 = vmatpush1.bf16.msra.mxu0 0
        %527 = vmatprep.subr.bf16.mxu0 0
        %528 = vmatpush1.bf16.msra.mxu0 0
        %529 = vmatprep.mubr.bf16.mxu0 0
        %530 = vmatmul.mubr.bf16.gmra.mrb[0].mxu0 %v422
        %v531 = vpop.f32.mrb[0].mxu0
        %v532 = vadd.f32 %v447, %v531
        %v533 = vpop.f32.mrb[0].mxu0
        %v534 = vpop.f32.mrb[0].mxu0
        %v535 = vadd.f32 %v447, %v534
        %v536 = vpop.f32.mrb[0].mxu0
        %537 = vmatprep.mubr.bf16.mxu0 0
        %538 = vmatmul.mubr.bf16.gmra.mrb[0].mxu0 %v423
        %v539 = vpop.f32.mrb[0].mxu0
        %v540 = vadd.f32 %v447, %v539
        %v541 = vpop.f32.mrb[0].mxu0
        %v542 = vpop.f32.mrb[0].mxu0
        %v543 = vadd.f32 %v447, %v542
        %v544 = vpop.f32.mrb[0].mxu0
        %545 = vmatprep.mubr.bf16.mxu0 0
        %546 = vmatmul.mubr.bf16.gmra.mrb[0].mxu0 %v424
        %v547 = vpop.f32.mrb[0].mxu0
        %v548 = vadd.f32 %v447, %v547
        %v549 = vpop.f32.mrb[0].mxu0
        %v550 = vpop.f32.mrb[0].mxu0
        %v551 = vadd.f32 %v447, %v550
        %v552 = vpop.f32.mrb[0].mxu0
        %553 = vmatprep.mubr.bf16.mxu0 0
        %554 = vmatmul.mubr.bf16.gmra.mrb[0].mxu0 %v425
        %v555 = vpop.f32.mrb[0].mxu0
        %v556 = vadd.f32 %v447, %v555
        %v557 = vpop.f32.mrb[0].mxu0
        %v558 = vpop.f32.mrb[0].mxu0
        %v559 = vadd.f32 %v447, %v558
        %v560 = vpop.f32.mrb[0].mxu0
        %561 = vdwg.mxu0
        %v562 = vmax.f32 %v532, 0.0
        %v563 = vmax.f32 %v535, 0.0
        %v564 = vmax.f32 %v540, 0.0
        %v565 = vmax.f32 %v543, 0.0
        %v566 = vmax.f32 %v548, 0.0
        %v567 = vmax.f32 %v551, 0.0
        %v568 = vmax.f32 %v556, 0.0
        %v569 = vmax.f32 %v559, 0.0
        %v570 = vpack.c.bf16 %v563, %v562
        %v571 = vpack.c.bf16 %v565, %v564
        %v572 = vpack.c.bf16 %v567, %v566
        %v573 = vpack.c.bf16 %v569, %v568
        %v574 = vld [vmem:[#allocation2] sm:$0xf]
        %v575 = vld [vmem:[#allocation2 + $0x4] sm:$0xf]
        %v576 = vld [vmem:[#allocation2 + $0x8] sm:$0xf]
        %v577 = vld [vmem:[#allocation2 + $0xc] sm:$0xf]
        %v578 = vld [vmem:[#allocation2 + $0x10] sm:$0xf]
        %v579 = vld [vmem:[#allocation2 + $0x14] sm:$0xf]
        %v580 = vld [vmem:[#allocation2 + $0x18] sm:$0xf]
        %v581 = vld [vmem:[#allocation2 + $0x1c] sm:$0xf]
        %v582 = vld [vmem:[#allocation2 + $0x20] sm:$0xf]
        %v583 = vld [vmem:[#allocation2 + $0x24] sm:$0xf]
        %v584 = vld [vmem:[#allocation2 + $0x28] sm:$0xf]
        %v585 = vld [vmem:[#allocation2 + $0x2c] sm:$0xf]
        %v586 = vld [vmem:[#allocation2 + $0x30] sm:$0xf]
        %v587 = vld [vmem:[#allocation2 + $0x34] sm:$0xf]
        %v588 = vld [vmem:[#allocation2 + $0x38] sm:$0xf]
        %v589 = vld [vmem:[#allocation2 + $0x3c] sm:$0xf]
        %v590 = vld [vmem:[%s6] sm:$0x1]
        %v592 = vlaneseq
        %v593 = vshrl.u32 %v592, 7
        %v594 = vsub.s32 0, %v593
        %v595 = vrot.slane %v590, %v594
        %v613 = vunpack.c.l.b16 %v574
        %v614 = vunpack.c.l.b16 %v575
        %v615 = vunpack.c.l.b16 %v576
        %v616 = vunpack.c.l.b16 %v577
        %v617 = vunpack.c.l.b16 %v578
        %v618 = vunpack.c.l.b16 %v579
        %v619 = vunpack.c.l.b16 %v580
        %v620 = vunpack.c.l.b16 %v581
        %v621 = vunpack.c.l.b16 %v582
        %v622 = vunpack.c.l.b16 %v583
        %v623 = vunpack.c.l.b16 %v584
        %v624 = vunpack.c.l.b16 %v585
        %v625 = vunpack.c.l.b16 %v586
        %v626 = vunpack.c.l.b16 %v587
        %v627 = vunpack.c.l.b16 %v588
        %v628 = vunpack.c.l.b16 %v589
        %v629 = vpack.c.b16 %v614, %v613
        %v630 = vpack.c.b16 %v616, %v615
        %v631 = vpack.c.b16 %v618, %v617
        %v632 = vpack.c.b16 %v620, %v619
        %v633 = vpack.c.b16 %v622, %v621
        %v634 = vpack.c.b16 %v624, %v623
        %v635 = vpack.c.b16 %v626, %v625
        %v636 = vpack.c.b16 %v628, %v627
        %645 = vmatprep.subr.bf16.mxu0 0
        %646 = vmatpush1.bf16.msra.mxu0 %v629
        %647 = vmatprep.subr.bf16.mxu0 0
        %648 = vmatpush1.bf16.msra.mxu0 %v630
        %649 = vmatprep.subr.bf16.mxu0 0
        %650 = vmatpush1.bf16.msra.mxu0 %v631
        %651 = vmatprep.subr.bf16.mxu0 0
        %652 = vmatpush1.bf16.msra.mxu0 %v632
        %653 = vmatprep.subr.bf16.mxu0 0
        %654 = vmatpush1.bf16.msra.mxu0 %v633
        %655 = vmatprep.subr.bf16.mxu0 0
        %656 = vmatpush1.bf16.msra.mxu0 %v634
        %657 = vmatprep.subr.bf16.mxu0 0
        %658 = vmatpush1.bf16.msra.mxu0 %v635
        %659 = vmatprep.subr.bf16.mxu0 0
        %660 = vmatpush1.bf16.msra.mxu0 %v636
        %661 = vmatprep.subr.bf16.mxu0 0
        %662 = vmatpush1.bf16.msra.mxu0 0
        %663 = vmatprep.subr.bf16.mxu0 0
        %664 = vmatpush1.bf16.msra.mxu0 0
        %665 = vmatprep.subr.bf16.mxu0 0
        %666 = vmatpush1.bf16.msra.mxu0 0
        %667 = vmatprep.subr.bf16.mxu0 0
        %668 = vmatpush1.bf16.msra.mxu0 0
        %669 = vmatprep.subr.bf16.mxu0 0
        %670 = vmatpush1.bf16.msra.mxu0 0
        %671 = vmatprep.subr.bf16.mxu0 0
        %672 = vmatpush1.bf16.msra.mxu0 0
        %673 = vmatprep.subr.bf16.mxu0 0
        %674 = vmatpush1.bf16.msra.mxu0 0
        %675 = vmatprep.subr.bf16.mxu0 0
        %676 = vmatpush1.bf16.msra.mxu0 0
        %677 = vmatprep.mubr.bf16.mxu0 0
        %678 = vmatmul.mubr.bf16.gmra.mrb[0].mxu0 %v570
        %v679 = vpop.f32.mrb[0].mxu0
        %v680 = vadd.f32 %v595, %v679
        %v681 = vpop.f32.mrb[0].mxu0
        %v682 = vpop.f32.mrb[0].mxu0
        %v683 = vadd.f32 %v595, %v682
        %v684 = vpop.f32.mrb[0].mxu0
        %685 = vmatprep.mubr.bf16.mxu0 0
        %686 = vmatmul.mubr.bf16.gmra.mrb[0].mxu0 %v571
        %v687 = vpop.f32.mrb[0].mxu0
        %v688 = vadd.f32 %v595, %v687
        %v689 = vpop.f32.mrb[0].mxu0
        %v690 = vpop.f32.mrb[0].mxu0
        %v691 = vadd.f32 %v595, %v690
        %v692 = vpop.f32.mrb[0].mxu0
        %693 = vmatprep.mubr.bf16.mxu0 0
        %694 = vmatmul.mubr.bf16.gmra.mrb[0].mxu0 %v572
        %v695 = vpop.f32.mrb[0].mxu0
        %v696 = vadd.f32 %v595, %v695
        %v697 = vpop.f32.mrb[0].mxu0
        %v698 = vpop.f32.mrb[0].mxu0
        %v699 = vadd.f32 %v595, %v698
        %v700 = vpop.f32.mrb[0].mxu0
        %701 = vmatprep.mubr.bf16.mxu0 0
        %702 = vmatmul.mubr.bf16.gmra.mrb[0].mxu0 %v573
        %v703 = vpop.f32.mrb[0].mxu0
        %v704 = vadd.f32 %v595, %v703
        %v705 = vpop.f32.mrb[0].mxu0
        %v706 = vpop.f32.mrb[0].mxu0
        %v707 = vadd.f32 %v595, %v706
        %v708 = vpop.f32.mrb[0].mxu0
        %709 = vdwg.mxu0
        %710 = vst [vmem:[%s287] sm:$0xff] %v680
        %711 = vst [vmem:[%s287 + $0x8] sm:$0xff] %v683
        %712 = vst [vmem:[%s287 + $0x10] sm:$0xff] %v688
        %713 = vst [vmem:[%s287 + $0x18] sm:$0xff] %v691
        %714 = vst [vmem:[%s287 + $0x20] sm:$0xff] %v696
        %715 = vst [vmem:[%s287 + $0x28] sm:$0xff] %v699
        %716 = vst [vmem:[%s287 + $0x30] sm:$0xff] %v704
        %717 = vst [vmem:[%s287 + $0x38] sm:$0xff] %v707
        %s718 = sand.u32 %s182, 1
        %s719 = scalar_lea.sflag [#allocation4], %s718
        %s720 = sand.u32 %s182, 1
        %s721 = smul.addr %s720, 64
        %s722 = scalar_lea.vmem [#allocation5], %s721
        // Predicated region
        $region53: #{tpu_custom_call.1} parent=47 // pred_check
          %p723 = pneg %p192
        $region54: #{tpu_custom_call.1} parent=47 // pred_check_branch
          %725 = sbr.rel (%p723) target = $region56
        $region55: #{tpu_custom_call.1} parent=47 // pred_region
          %s726 = smul.u32 8, %s22
          %s728 = ssub.s32 1024, 1024
          %729 = vsyncadd %s719, %s728
          %s730 = smul.addr %s726, 128
          %s731 = scalar_lea.hbm %s7, %s730
          %s732 = sshll.u32 %s722, 4
          %s733 = int_to_ptr.vmem [resolvable:$true] %s732
          %738 = dma.vmem_to_hbm [thread:$0]  %s733, 1024, %s731, %s719, 128, 128, 8
        $region56: #{tpu_custom_call.1} parent=47 // pred_fallthru
          _
      $region48: #{tpu_custom_call.1} parent=5 // pred_fallthru
        _
      %p739 = scmp.le.s32.totalorder 2, %s17
      // Predicated region
      $region57: #{tpu_custom_call.1} parent=5 // pred_check
        %p740 = pneg %p739
      $region58: #{tpu_custom_call.1} parent=5 // pred_check_branch
        %742 = sbr.rel (%p740) target = $region60
      $region59: #{tpu_custom_call.1} parent=5 // pred_region
        %s743 = ssub.s32 %s17, 2
        // Predicated region
        $region61: #{tpu_custom_call.1} parent=59 // pred_check
          %p744 = pneg %p198
        $region62: #{tpu_custom_call.1} parent=59 // pred_check_branch
          %746 = sbr.rel (%p744) target = $region64
        $region63: #{tpu_custom_call.1} parent=59 // pred_region
          %s747 = sand.u32 %s183, 1
          %s748 = scalar_lea.sflag [#allocation4], %s747
          %s749 = sand.u32 %s183, 1
          %s750 = smul.addr %s749, 64
          %s751 = scalar_lea.vmem [#allocation5], %s750
          %752 = dma.done %s748, 1024
        $region64: #{tpu_custom_call.1} parent=59 // pred_fallthru
          _
      $region60: #{tpu_custom_call.1} parent=5 // pred_fallthru
        _
    $region6: #{tpu_custom_call.1} parent=1 // loop_footer
      %s21 = sadd.s32 1, %s17
    $region7: #{tpu_custom_call.1} parent=1 // loop_footer_branch
      %16 = sbr.rel target = $region3
    $region8: #{tpu_custom_call.1} parent=1 // loop_exit
      _
    %753 = vsyncpa [#allocation3], 1
    %s754 = scalar_lea.sflag [#allocation3], 1
    %755 = vsyncpa %s754, 1
    %756 = vsyncpa [#allocation4], 1
    %s757 = scalar_lea.sflag [#allocation4], 1
    %758 = vsyncpa %s757, 1

</llo_original>
